<compile_context>
chip_gen: v6e
topology: v6e:2x2x1
jax: 0.10.0
libtpu: 0.0.40
codegen_flags: <defaults>
</compile_context>

<pallas_src>
import math
import functools

import jax
import jax.numpy as jnp
from jax.experimental import pallas as pl
from jax.experimental.pallas import tpu as pltpu

_MIB = 1024 * 1024


def _round_up(x, m):
    return ((x + m - 1) // m) * m


def _cdiv(a, b):
    return -(-a // b)


def _vmem_capacity_bytes():
    """Physical VMEM per TensorCore; conservative fallback = v7x (64 MiB)."""
    try:
        return int(pltpu.get_tpu_info().vmem_capacity_bytes)
    except Exception:
        return 64 * _MIB


def _pick_tk(n, cap):
    """Reduction-tile size (adj columns / x rows). Returns (TK, nk)."""
    cap = max(128, (int(cap) // 128) * 128)
    if n <= cap:
        return n, 1                               # single reduction step, no column pad
    for t in range(cap, 127, -128):               # prefer a divisor -> no padded adj copy
        if n % t == 0 and (t >= min(cap, 512) or n // t <= 16):
            return t, n // t
    return cap, _cdiv(n, cap)                     # ragged: pad columns (fused with cast)


def _pick_tm(n, cap):
    """Row-tile size: prefer no row padding, >=2 row tiles (2 TCs on v7x), few tiles."""
    cap = max(8, (int(cap) // 8) * 8)
    if n < 16:
        return n                                  # block dim == full array dim is legal
    start = min(cap, ((n // 2) // 8) * 8)
    for t in range(start, 7, -8):                 # divisor -> no padded copy of adj rows
        if n % t == 0 and (t >= min(cap, 256) or n // t <= 8):
            return t
    return min(cap, _round_up(_cdiv(n, 2), 8))    # ragged: pad rows (fused with cast)


def _prep(a, shape, dtype=None):
    """Cast + zero-pad `a` to `shape`/`dtype` as one fused op; no-op when already matching."""
    dtype = a.dtype if dtype is None else jnp.dtype(dtype)
    shape = tuple(shape)
    if a.shape == shape:
        return a if a.dtype == dtype else a.astype(dtype)
    out = jnp.zeros(shape, dtype)
    return out.at[tuple(slice(0, s) for s in a.shape)].set(a.astype(dtype))


def _gcn_kernel(*refs, alpha, theta, variant, residual, single_step, x_resident, tk):
    """refs = (adj, x, h0, [x_rows], W | (W_top, W_bot), out, [acc])."""
    it = iter(refs)
    adj_ref = next(it)                              # (TM, TK) compute-dtype tile
    x_ref = next(it)                                # (TK, FP) or resident (NC, FP)
    h0_ref = next(it)                               # (TM, FP) resident across k
    xrow_ref = next(it) if residual else None       # (TM, FP) resident across k
    if variant:
        w_top_ref = next(it)                        # (FP, FP)  W[:F]
        w_bot_ref = next(it)                        # (FP, FP)  W[F:]
    else:
        w_ref = next(it)                            # (FP, FP)
    out_ref = next(it)                              # (TM, FP)
    acc_ref = None if single_step else next(it)     # (TM, FP) f32 scratch

    def x_tile():
        if (not single_step) and x_resident:
            start = pl.multiple_of(pl.program_id(1) * tk, tk)
            return x_ref[pl.ds(start, tk), :]
        return x_ref[...]

    def epilogue(hi):
        h0 = h0_ref[...].astype(jnp.float32)
        r = (1.0 - alpha) * hi + alpha * h0
        if variant:
            wdt = w_top_ref.dtype
            # concat([hi, h0], 1) @ W  ==  hi @ W[:F] + h0 @ W[F:]  (no lane-axis concat)
            mm = jnp.dot(hi.astype(wdt), w_top_ref[...],
                         preferred_element_type=jnp.float32)
            mm = mm + jnp.dot(h0_ref[...].astype(wdt), w_bot_ref[...],
                              preferred_element_type=jnp.float32)
        else:
            wdt = w_ref.dtype
            mm = jnp.dot(r.astype(wdt), w_ref[...],
                         preferred_element_type=jnp.float32)
        out = theta * mm + (1.0 - theta) * r
        if residual:
            out = out + xrow_ref[...].astype(jnp.float32)
        out_ref[...] = out.astype(out_ref.dtype)

    if single_step:
        epilogue(jnp.dot(adj_ref[...], x_tile(), preferred_element_type=jnp.float32))
    else:
        k = pl.program_id(1)

        @pl.when(k == 0)
        def _():
            acc_ref[...] = jnp.zeros_like(acc_ref)

        acc_ref[...] += jnp.dot(adj_ref[...], x_tile(),
                                preferred_element_type=jnp.float32)

        @pl.when(k == pl.num_programs(1) - 1)
        def _():
            epilogue(acc_ref[...])


def graph_convolution(x, adj, h0, weight, *, lamda, alpha, l,
                      variant=False, residual=False,
                      tm=1024, tk=1024, compute_dtype=jnp.bfloat16):
    """x: (N, F), adj: (N, N) dense, h0: (N, F), weight: (2F, F) if variant else (F, F).

    compute_dtype: dtype of the HBM-dominant streams (adj, x) and MXU weights; f32
    accumulation is kept throughout.  Pass None to keep the input dtypes exactly.
    # TODO(synk): int8 adjacency (per-row scale) is a further 2x HBM cut on v5e/v6e
    # MXUs; v7x has no int MXU path (fp8 only), so it is not enabled here.
    """
    n, f_in = x.shape
    f_out = weight.shape[1]
    # Same implicit constraint as the PyTorch module (needed for `+ r` / residual).
    assert f_out == f_in, "GraphConvolution combine requires out_features == in_features"
    assert adj.shape == (n, n) and h0.shape == (n, f_in)
    assert weight.shape[0] == (2 * f_in if variant else f_in)

    theta = min(1.0, math.log(lamda / l + 1.0))
    out_dtype = x.dtype
    cd = jnp.dtype(adj.dtype if compute_dtype is None else compute_dtype)
    cd_size = cd.itemsize
    io_size = jnp.dtype(x.dtype).itemsize
    FP = _round_up(f_in, 128)                      # lane-dense feature / output width

    # ---- per-generation VMEM budget & tile selection --------------------------------
    vmem_cap = _vmem_capacity_bytes()
    budget = 40 * _MIB if vmem_cap <= 64 * _MIB else 96 * _MIB

    tk_cap, tm_cap = int(tk), int(tm)
    while True:
        TK, nk = _pick_tk(n, tk_cap)
        TM = _pick_tm(n, tm_cap)
        n_cols = nk * TK
        n_rows = _round_up(n, TM)
        single_step = nk == 1
        x_resident = single_step or (
            n_cols * FP * cd_size <= min(12 * _MIB, budget // 4))
        adj_bufs = 3 if nk > 1 else 2
        est = adj_bufs * TM * TK * cd_size                       # adj tiles
        est += (n_cols * FP * cd_size) if x_resident else 2 * TK * FP * cd_size
        est += 2 * TM * FP * io_size                             # h0
        est += 2 * TM * FP * io_size if residual else 0          # residual rows of x
        est += 2 * TM * FP * io_size                             # output tile
        est += (2 if variant else 1) * FP * FP * cd_size         # weights (single-buffered)
        est += TM * FP * 4 if nk > 1 else 0                      # f32 accumulator scratch
        est += 2 * _MIB                                          # epilogue temps / slack
        if est <= budget or (tk_cap <= 512 and tm_cap <= 256):
            break
        if tk_cap > 512:
            tk_cap //= 2
        else:
            tm_cap //= 2

    grid_m = n_rows // TM
    vmem_limit = int(min(vmem_cap - 2 * _MIB, max(est + 8 * _MIB, 32 * _MIB)))

    # ---- operands: fused cast+pad only when actually needed -------------------------
    adj_p = _prep(adj, (n_rows, n_cols), cd)       # passed through unchanged when divisible
    x_cols = _prep(x, (n_cols, FP), cd)            # matmul operand (reduction axis)
    h0_p = _prep(h0, (n_rows, FP))                 # stays in input dtype (f32 blend)

    inputs = [adj_p, x_cols, h0_p]
    if residual:
        inputs.append(_prep(x, (n_rows, FP)))
    if variant:
        inputs += [_prep(weight[:f_in], (FP, FP), cd),
                   _prep(weight[f_in:], (FP, FP), cd)]
    else:
        inputs.append(_prep(weight, (FP, FP), cd))

    if single_step:
        adj_map = lambda i: (i, 0)
        row_map = lambda i: (i, 0)
        const_map = lambda i: (0, 0)
        grid = (grid_m,)
        dims = ("parallel",)
    else:
        adj_map = lambda i, k: (i, k)
        row_map = lambda i, k: (i, 0)
        const_map = lambda i, k: (0, 0)
        grid = (grid_m, nk)
        dims = ("parallel", "arbitrary")

    kernel = functools.partial(
        _gcn_kernel, alpha=float(alpha), theta=float(theta), variant=variant,
        residual=residual, single_step=single_step, x_resident=x_resident, tk=TK)

    f_sup = 2 * f_in if variant else f_in
    cost = pl.CostEstimate(
        flops=2 * n * n * f_in + 2 * n * f_sup * f_out + 8 * n * f_in,
        transcendentals=0,
        bytes_accessed=cd_size * (n * n + n * f_in + f_sup * f_out)
        + io_size * ((3 if residual else 2) * n * f_in),
    )

    def _run(with_hints):
        def b(shape, imap, nbuf=None):
            if nbuf is None or not with_hints:
                return pl.BlockSpec(shape, imap)
            return pl.BlockSpec(shape, imap, pipeline_mode=pl.Buffered(nbuf))

        in_specs = [b((TM, TK), adj_map, 3 if not single_step else None)]
        if x_resident:
            in_specs.append(b((n_cols, FP), const_map, 1))   # whole x resident in VMEM
        else:
            in_specs.append(b((TK, FP), lambda i, k: (k, 0)))
        in_specs.append(b((TM, FP), row_map))                # h0
        if residual:
            in_specs.append(b((TM, FP), row_map))            # residual rows of x
        for _ in range(2 if variant else 1):
            in_specs.append(b((FP, FP), const_map, 1))       # weights: single-buffered

        return pl.pallas_call(
            kernel,
            out_shape=jax.ShapeDtypeStruct((n_rows, FP), out_dtype),
            grid_spec=pltpu.PrefetchScalarGridSpec(
                num_scalar_prefetch=0,
                grid=grid,
                in_specs=in_specs,
                out_specs=pl.BlockSpec((TM, FP), row_map),
                scratch_shapes=[] if single_step
                else [pltpu.VMEM((TM, FP), jnp.float32)],
            ),
            compiler_params=pltpu.CompilerParams(
                dimension_semantics=dims,
                vmem_limit_bytes=vmem_limit,
            ),
            cost_estimate=cost,
        )(*inputs)

    try:
        out_p = _run(True)
    except Exception:
        # Safety net: retry without per-BlockSpec buffer-count hints (older jax).
        out_p = _run(False)

    return out_p[:n, :f_out]


def init_weight(key, in_features, out_features, variant=False):
    """Deterministic re-implementation of reset_parameters()."""
    fan_in = 2 * in_features if variant else in_features
    stdv = 1.0 / math.sqrt(out_features)
    return jax.random.uniform(key, (fan_in, out_features), dtype=jnp.float32,
                              minval=-stdv, maxval=stdv)


def _reference(x, adj, h0, w, *, lamda, alpha, l, variant, residual):
    dot = functools.partial(jnp.dot, precision=jax.lax.Precision.HIGHEST)
    theta = min(1.0, math.log(lamda / l + 1.0))
    hi = dot(adj, x)
    if variant:
        support = jnp.concatenate([hi, h0], axis=1)
        r = (1.0 - alpha) * hi + alpha * h0
    else:
        support = (1.0 - alpha) * hi + alpha * h0
        r = support
    out = theta * dot(support, w) + (1.0 - theta) * r
    if residual:
        out = out + x
    return out


def _make_inputs(key, n, f):
    k_adj, k_x, k_h0 = jax.random.split(key, 3)
    x = jax.random.normal(k_x, (n, f), dtype=jnp.float32)
    h0 = jax.random.normal(k_h0, (n, f), dtype=jnp.float32)
    adj_raw = jax.random.uniform(k_adj, (n, n), dtype=jnp.float32)
    adj = adj_raw / jnp.sum(adj_raw, axis=1, keepdims=True)   # row-stochastic stand-in
    return x, adj, h0


if __name__ == "__main__":
    key = jax.random.PRNGKey(0)
    k_in1, k_in2, k_in3, k_w1, k_w2, k_w3, k_w4 = jax.random.split(key, 7)
    lamda, alpha, l = 1.5, 0.1, 2

    # 1) tiny graph, non-variant, residual, exact-dtype path (single-step kernel)
    x, adj, h0 = _make_inputs(k_in1, n=8, f=32)
    w = init_weight(k_w1, 32, 32, variant=False)
    out = jax.block_until_ready(graph_convolution(
        x, adj, h0, w, lamda=lamda, alpha=alpha, l=l,
        variant=False, residual=True, compute_dtype=None))
    ref = _reference(x, adj, h0, w, lamda=lamda, alpha=alpha, l=l,
                     variant=False, residual=True)
    assert out.shape == ref.shape
    assert jnp.allclose(out, ref, atol=5e-3, rtol=5e-3)

    # 2) variant=True (split-weight, concat-free), exact-dtype path
    w_v = init_weight(k_w2, 32, 32, variant=True)
    out_v = jax.block_until_ready(graph_convolution(
        x, adj, h0, w_v, lamda=lamda, alpha=alpha, l=l,
        variant=True, residual=False, compute_dtype=None))
    ref_v = _reference(x, adj, h0, w_v, lamda=lamda, alpha=alpha, l=l,
                       variant=True, residual=False)
    assert jnp.allclose(out_v, ref_v, atol=5e-3, rtol=5e-3)

    # 3) tiled reduction (nk>1), resident x, f32 accumulator, exact-dtype path
    x2, adj2, h02 = _make_inputs(k_in2, n=200, f=64)
    w2 = init_weight(k_w3, 64, 64, variant=True)
    out2 = jax.block_until_ready(graph_convolution(
        x2, adj2, h02, w2, lamda=lamda, alpha=alpha, l=l,
        variant=True, residual=True, tm=128, tk=128, compute_dtype=None))
    ref2 = _reference(x2, adj2, h02, w2, lamda=lamda, alpha=alpha, l=l,
                      variant=True, residual=True)
    assert jnp.allclose(out2, ref2, atol=5e-3, rtol=5e-3)

    # 3b) same tiled path with the default bf16 adj/x/W streams (f32 accumulation)
    out2_bf16 = jax.block_until_ready(graph_convolution(
        x2, adj2, h02, w2, lamda=lamda, alpha=alpha, l=l,
        variant=True, residual=True, tm=128, tk=128))
    assert jnp.allclose(out2_bf16, ref2, atol=5e-2, rtol=5e-2)

    # 4) N, F multiples of (8,128): tiles divide N -> adj passed with no host-side copy
    x3, adj3, h03 = _make_inputs(k_in3, n=384, f=128)
    w3 = init_weight(k_w4, 128, 128, variant=False)
    out3 = jax.block_until_ready(graph_convolution(
        x3, adj3, h03, w3, lamda=lamda, alpha=alpha, l=l,
        variant=False, residual=True, tm=128, tk=128, compute_dtype=None))
    ref3 = _reference(x3, adj3, h03, w3, lamda=lamda, alpha=alpha, l=l,
                      variant=False, residual=True)
    assert jnp.allclose(out3, ref3, atol=5e-3, rtol=5e-3)

    print("KERNEL_OK")
</pallas_src>

<mosaic_0001>
module attributes {stable_mosaic.version = 11 : i64} {
  func.func @_gcn_kernel(%arg0: i32, %arg1: memref<8x8xf32, #tpu.memory_space<vmem>>, %arg2: memref<8x128xf32, #tpu.memory_space<vmem>>, %arg3: memref<8x128xf32, #tpu.memory_space<vmem>>, %arg4: memref<8x128xf32, #tpu.memory_space<vmem>>, %arg5: memref<128x128xf32, #tpu.memory_space<vmem>>, %arg6: memref<8x128xf32, #tpu.memory_space<vmem>>) attributes {dimension_semantics = [#tpu.dimension_semantics<parallel>], iteration_bounds = array<i64: 1>, scalar_prefetch = 0 : i64, scratch_operands = 0 : i64, tpu.core_type = #tpu.core_type<tc>, window_params = [{transform_indices = @transform_0, window_bounds = array<i64: 8, 8>}, {pipeline_mode = #tpu.pipeline_mode<synchronous>, transform_indices = @transform_1, window_bounds = array<i64: 8, 128>}, {transform_indices = @transform_2, window_bounds = array<i64: 8, 128>}, {transform_indices = @transform_3, window_bounds = array<i64: 8, 128>}, {pipeline_mode = #tpu.pipeline_mode<synchronous>, transform_indices = @transform_4, window_bounds = array<i64: 128, 128>}, {transform_indices = @transform_5, window_bounds = array<i64: 8, 128>}]} {
    %c0 = arith.constant 0 : index
    %c0_0 = arith.constant 0 : index
    %0 = vector.load %arg1[%c0, %c0_0] : memref<8x8xf32, #tpu.memory_space<vmem>>, vector<8x8xf32>
    %c0_1 = arith.constant 0 : index
    %c0_2 = arith.constant 0 : index
    %1 = vector.load %arg2[%c0_1, %c0_2] : memref<8x128xf32, #tpu.memory_space<vmem>>, vector<8x128xf32>
    %cst = arith.constant dense<0.000000e+00> : vector<8x128xf32>
    %2 = tpu.matmul %0, %1, %cst {dimension_numbers = #tpu.dot_dimension_numbers<[1], [0], [0], [1], [0, 0, 1, 1], [], []>} : vector<8x8xf32>, vector<8x128xf32>, vector<8x128xf32> -> vector<8x128xf32>
    %c0_3 = arith.constant 0 : index
    %c0_4 = arith.constant 0 : index
    %3 = vector.load %arg3[%c0_3, %c0_4] : memref<8x128xf32, #tpu.memory_space<vmem>>, vector<8x128xf32>
    %cst_5 = arith.constant 0.899999976 : f32
    %4 = vector.broadcast %cst_5 : f32 to vector<8x128xf32>
    %5 = arith.mulf %4, %2 : vector<8x128xf32>
    %cst_6 = arith.constant 1.000000e-01 : f32
    %6 = vector.broadcast %cst_6 : f32 to vector<8x128xf32>
    %7 = arith.mulf %6, %3 : vector<8x128xf32>
    %8 = arith.addf %5, %7 : vector<8x128xf32>
    %c0_7 = arith.constant 0 : index
    %c0_8 = arith.constant 0 : index
    %9 = vector.load %arg5[%c0_7, %c0_8] : memref<128x128xf32, #tpu.memory_space<vmem>>, vector<128x128xf32>
    %cst_9 = arith.constant dense<0.000000e+00> : vector<8x128xf32>
    %10 = tpu.matmul %8, %9, %cst_9 {dimension_numbers = #tpu.dot_dimension_numbers<[1], [0], [0], [1], [0, 0, 1, 1], [], []>} : vector<8x128xf32>, vector<128x128xf32>, vector<8x128xf32> -> vector<8x128xf32>
    %cst_10 = arith.constant 0.559615791 : f32
    %11 = vector.broadcast %cst_10 : f32 to vector<8x128xf32>
    %12 = arith.mulf %11, %10 : vector<8x128xf32>
    %cst_11 = arith.constant 0.440384209 : f32
    %13 = vector.broadcast %cst_11 : f32 to vector<8x128xf32>
    %14 = arith.mulf %13, %8 : vector<8x128xf32>
    %15 = arith.addf %12, %14 : vector<8x128xf32>
    %c0_12 = arith.constant 0 : index
    %c0_13 = arith.constant 0 : index
    %16 = vector.load %arg4[%c0_12, %c0_13] : memref<8x128xf32, #tpu.memory_space<vmem>>, vector<8x128xf32>
    %17 = arith.addf %15, %16 : vector<8x128xf32>
    %c0_14 = arith.constant 0 : index
    %c0_15 = arith.constant 0 : index
    %18 = vector.load %arg6[%c0_14, %c0_15] : memref<8x128xf32, #tpu.memory_space<vmem>>, vector<8x128xf32>
    tpu.vector_store %arg6[%c0_14, %c0_15], %17 {strides = array<i32>} : memref<8x128xf32, #tpu.memory_space<vmem>>, vector<8x128xf32>,
    return
  }
  func.func @transform_0(%arg0: i32) -> (i32, i32) {
    %c0_i32 = arith.constant 0 : i32
    %c0_i32_0 = arith.constant 0 : i32
    return %arg0, %c0_i32 : i32, i32
  }
  func.func @transform_1(%arg0: i32) -> (i32, i32) {
    %c0_i32 = arith.constant 0 : i32
    %c0_i32_0 = arith.constant 0 : i32
    %c0_i32_1 = arith.constant 0 : i32
    return %c0_i32, %c0_i32_0 : i32, i32
  }
  func.func @transform_2(%arg0: i32) -> (i32, i32) {
    %c0_i32 = arith.constant 0 : i32
    %c0_i32_0 = arith.constant 0 : i32
    return %arg0, %c0_i32 : i32, i32
  }
  func.func @transform_3(%arg0: i32) -> (i32, i32) {
    %c0_i32 = arith.constant 0 : i32
    %c0_i32_0 = arith.constant 0 : i32
    return %arg0, %c0_i32 : i32, i32
  }
  func.func @transform_4(%arg0: i32) -> (i32, i32) {
    %c0_i32 = arith.constant 0 : i32
    %c0_i32_0 = arith.constant 0 : i32
    %c0_i32_1 = arith.constant 0 : i32
    return %c0_i32, %c0_i32_0 : i32, i32
  }
  func.func @transform_5(%arg0: i32) -> (i32, i32) {
    %c0_i32 = arith.constant 0 : i32
    %c0_i32_0 = arith.constant 0 : i32
    return %arg0, %c0_i32 : i32, i32
  }
}

module attributes {stable_mosaic.version = 11 : i64} {
  func.func @_gcn_kernel(%arg0: i32, %arg1: memref<8x8xf32, #tpu.memory_space<vmem>>, %arg2: memref<8x128xf32, #tpu.memory_space<vmem>>, %arg3: memref<8x128xf32, #tpu.memory_space<vmem>>, %arg4: memref<8x128xf32, #tpu.memory_space<vmem>>, %arg5: memref<128x128xf32, #tpu.memory_space<vmem>>, %arg6: memref<8x128xf32, #tpu.memory_space<vmem>>) attributes {dimension_semantics = [#tpu.dimension_semantics<parallel>], iteration_bounds = array<i64: 1>, scalar_prefetch = 0 : i64, scratch_operands = 0 : i64, tpu.core_type = #tpu.core_type<tc>, window_params = [{transform_indices = @transform_0, window_bounds = array<i64: 8, 8>}, {pipeline_mode = #tpu.pipeline_mode<synchronous>, transform_indices = @transform_1, window_bounds = array<i64: 8, 128>}, {transform_indices = @transform_2, window_bounds = array<i64: 8, 128>}, {transform_indices = @transform_3, window_bounds = array<i64: 8, 128>}, {pipeline_mode = #tpu.pipeline_mode<synchronous>, transform_indices = @transform_4, window_bounds = array<i64: 128, 128>}, {transform_indices = @transform_5, window_bounds = array<i64: 8, 128>}]} {
    %c0 = arith.constant 0 : index
    %c0_0 = arith.constant 0 : index
    %0 = vector.load %arg1[%c0, %c0_0] : memref<8x8xf32, #tpu.memory_space<vmem>>, vector<8x8xf32>
    %c0_1 = arith.constant 0 : index
    %c0_2 = arith.constant 0 : index
    %1 = vector.load %arg2[%c0_1, %c0_2] : memref<8x128xf32, #tpu.memory_space<vmem>>, vector<8x128xf32>
    %cst = arith.constant dense<0.000000e+00> : vector<8x128xf32>
    %2 = tpu.matmul %0, %1, %cst {dimension_numbers = #tpu.dot_dimension_numbers<[1], [0], [0], [1], [0, 0, 1, 1], [], []>} : vector<8x8xf32>, vector<8x128xf32>, vector<8x128xf32> -> vector<8x128xf32>
    %c0_3 = arith.constant 0 : index
    %c0_4 = arith.constant 0 : index
    %3 = vector.load %arg3[%c0_3, %c0_4] : memref<8x128xf32, #tpu.memory_space<vmem>>, vector<8x128xf32>
    %cst_5 = arith.constant 0.899999976 : f32
    %4 = vector.broadcast %cst_5 : f32 to vector<8x128xf32>
    %5 = arith.mulf %4, %2 : vector<8x128xf32>
    %cst_6 = arith.constant 1.000000e-01 : f32
    %6 = vector.broadcast %cst_6 : f32 to vector<8x128xf32>
    %7 = arith.mulf %6, %3 : vector<8x128xf32>
    %8 = arith.addf %5, %7 : vector<8x128xf32>
    %c0_7 = arith.constant 0 : index
    %c0_8 = arith.constant 0 : index
    %9 = vector.load %arg5[%c0_7, %c0_8] : memref<128x128xf32, #tpu.memory_space<vmem>>, vector<128x128xf32>
    %cst_9 = arith.constant dense<0.000000e+00> : vector<8x128xf32>
    %10 = tpu.matmul %8, %9, %cst_9 {dimension_numbers = #tpu.dot_dimension_numbers<[1], [0], [0], [1], [0, 0, 1, 1], [], []>} : vector<8x128xf32>, vector<128x128xf32>, vector<8x128xf32> -> vector<8x128xf32>
    %cst_10 = arith.constant 0.559615791 : f32
    %11 = vector.broadcast %cst_10 : f32 to vector<8x128xf32>
    %12 = arith.mulf %11, %10 : vector<8x128xf32>
    %cst_11 = arith.constant 0.440384209 : f32
    %13 = vector.broadcast %cst_11 : f32 to vector<8x128xf32>
    %14 = arith.mulf %13, %8 : vector<8x128xf32>
    %15 = arith.addf %12, %14 : vector<8x128xf32>
    %c0_12 = arith.constant 0 : index
    %c0_13 = arith.constant 0 : index
    %16 = vector.load %arg4[%c0_12, %c0_13] : memref<8x128xf32, #tpu.memory_space<vmem>>, vector<8x128xf32>
    %17 = arith.addf %15, %16 : vector<8x128xf32>
    %c0_14 = arith.constant 0 : index
    %c0_15 = arith.constant 0 : index
    %18 = vector.load %arg6[%c0_14, %c0_15] : memref<8x128xf32, #tpu.memory_space<vmem>>, vector<8x128xf32>
    tpu.vector_store %arg6[%c0_14, %c0_15], %17 {strides = array<i32>} : memref<8x128xf32, #tpu.memory_space<vmem>>, vector<8x128xf32>,
    return
  }
  func.func @transform_0(%arg0: i32) -> (i32, i32) {
    %c0_i32 = arith.constant 0 : i32
    %c0_i32_0 = arith.constant 0 : i32
    return %arg0, %c0_i32 : i32, i32
  }
  func.func @transform_1(%arg0: i32) -> (i32, i32) {
    %c0_i32 = arith.constant 0 : i32
    %c0_i32_0 = arith.constant 0 : i32
    %c0_i32_1 = arith.constant 0 : i32
    return %c0_i32, %c0_i32_0 : i32, i32
  }
  func.func @transform_2(%arg0: i32) -> (i32, i32) {
    %c0_i32 = arith.constant 0 : i32
    %c0_i32_0 = arith.constant 0 : i32
    return %arg0, %c0_i32 : i32, i32
  }
  func.func @transform_3(%arg0: i32) -> (i32, i32) {
    %c0_i32 = arith.constant 0 : i32
    %c0_i32_0 = arith.constant 0 : i32
    return %arg0, %c0_i32 : i32, i32
  }
  func.func @transform_4(%arg0: i32) -> (i32, i32) {
    %c0_i32 = arith.constant 0 : i32
    %c0_i32_0 = arith.constant 0 : i32
    %c0_i32_1 = arith.constant 0 : i32
    return %c0_i32, %c0_i32_0 : i32, i32
  }
  func.func @transform_5(%arg0: i32) -> (i32, i32) {
    %c0_i32 = arith.constant 0 : i32
    %c0_i32_0 = arith.constant 0 : i32
    return %arg0, %c0_i32 : i32, i32
  }
}

</mosaic_0001>

<llo_original>
// kernel: tpu_custom_call.1
$region0: #{tpu_custom_call.1}
  #allocation0 [shape = 'u32[]', space=smem, size = 0x4, offset = 0x4, fixed_abs, tag = 'smem constant byte address 0x4 - core index']
  #allocation1 [shape = 'u32[144,128]{1,0:T(1,128)}', space=vmem, size = 0x12000, scoped, tag = 'internal scratch']
  %s0 = inlined_call_operand.hbm [shape: f32[8,8], index: 0, kind: input, shape index: {}]
  %s1 = inlined_call_operand.hbm [shape: f32[8,128], index: 1, kind: input, shape index: {}]
  %s2 = inlined_call_operand.hbm [shape: f32[8,128], index: 2, kind: input, shape index: {}]
  %s3 = inlined_call_operand.hbm [shape: f32[8,128], index: 3, kind: input, shape index: {}]
  %s4 = inlined_call_operand.hbm [shape: f32[128,128], index: 4, kind: input, shape index: {}]
  %s5 = inlined_call_operand.hbm [shape: f32[8,128], index: 5, kind: output, shape index: {}]
  %s6 = sld [smem:[#allocation0]]
  $region50: #{tpu_custom_call.1} parent=0
    _
  %s8 = ssub.s32 1, %s6
  %s9 = scalar_select 0, %s8, %s6
  $region1: #{tpu_custom_call.1} parent=0
    #allocation2 [shape = 'u8[4096]{0}', space=vmem, size = 0x1000, scoped, tag = 'input window, operand 0, single buffered']
    #allocation3 [shape = 's32[1]{0}', space=sflag, size = 0x4, scoped, tag = 'scoped memory for tpu_custom_call.1']
    #allocation4 [shape = 's32[1]{0}', space=sflag, size = 0x4, scoped, tag = 'scoped memory for tpu_custom_call.1']
    #allocation5 [shape = 'u8[4096]{0}', space=vmem, size = 0x1000, scoped, tag = 'input window, operand 1, single buffered']
    #allocation6 [shape = 's32[1]{0}', space=sflag, size = 0x4, scoped, tag = 'scoped memory for tpu_custom_call.1']
    #allocation7 [shape = 'u8[4096]{0}', space=vmem, size = 0x1000, scoped, tag = 'input window, operand 2, single buffered']
    #allocation8 [shape = 'u8[4096]{0}', space=vmem, size = 0x1000, scoped, tag = 'input window, operand 3, single buffered']
    #allocation9 [shape = 's32[1]{0}', space=sflag, size = 0x4, scoped, tag = 'scoped memory for tpu_custom_call.1']
    #allocation10 [shape = 'u8[65536]{0}', space=vmem, size = 0x10000, scoped, tag = 'input window, operand 4, single buffered']
    #allocation11 [shape = 'u8[4096]{0}', space=vmem, size = 0x1000, scoped, tag = 'output window, operand 0, single buffered']
    %10 = vsyncpa [#allocation3], 0
    %11 = vsyncpa [#allocation6], 0
    %12 = vsyncpa [#allocation9], 0
    %13 = vsyncpa [#allocation4], 0
    // Predicated region
    $region2: #{tpu_custom_call.1} parent=1 // pred_check
      _
    $region3: #{tpu_custom_call.1} parent=1 // pred_check_branch
      %15 = sbr.rel (0) target = $region5
    $region4: #{tpu_custom_call.1} parent=1 // pred_region
      %s17 = ssub.s32 128, 128
      %18 = vsyncadd [#allocation3], %s17
      %s20 = sshll.u32 [#allocation2], 4
      %s21 = int_to_ptr.vmem [resolvable:$true] %s20
      %23 = dma.hbm_to_vmem [thread:$0]  %s0, 128, %s21, [#allocation3]
    $region5: #{tpu_custom_call.1} parent=1 // pred_fallthru
      _
    // Predicated region
    $region6: #{tpu_custom_call.1} parent=1 // pred_check
      _
    $region7: #{tpu_custom_call.1} parent=1 // pred_check_branch
      %25 = sbr.rel (0) target = $region9
    $region8: #{tpu_custom_call.1} parent=1 // pred_region
      %s27 = ssub.s32 128, 128
      %28 = vsyncadd [#allocation6], %s27
      %s30 = sshll.u32 [#allocation5], 4
      %s31 = int_to_ptr.vmem [resolvable:$true] %s30
      %33 = dma.hbm_to_vmem [thread:$0]  %s1, 128, %s31, [#allocation6]
    $region9: #{tpu_custom_call.1} parent=1 // pred_fallthru
      _
    // Predicated region
    $region10: #{tpu_custom_call.1} parent=1 // pred_check
      _
    $region11: #{tpu_custom_call.1} parent=1 // pred_check_branch
      %35 = sbr.rel (0) target = $region13
    $region12: #{tpu_custom_call.1} parent=1 // pred_region
      %s37 = ssub.s32 128, 128
      %38 = vsyncadd [#allocation6], %s37
      %s40 = sshll.u32 [#allocation7], 4
      %s41 = int_to_ptr.vmem [resolvable:$true] %s40
      %43 = dma.hbm_to_vmem [thread:$0]  %s2, 128, %s41, [#allocation6]
    $region13: #{tpu_custom_call.1} parent=1 // pred_fallthru
      _
    // Predicated region
    $region14: #{tpu_custom_call.1} parent=1 // pred_check
      _
    $region15: #{tpu_custom_call.1} parent=1 // pred_check_branch
      %45 = sbr.rel (0) target = $region17
    $region16: #{tpu_custom_call.1} parent=1 // pred_region
      %s47 = ssub.s32 128, 128
      %48 = vsyncadd [#allocation9], %s47
      %s50 = sshll.u32 [#allocation8], 4
      %s51 = int_to_ptr.vmem [resolvable:$true] %s50
      %53 = dma.hbm_to_vmem [thread:$0]  %s3, 128, %s51, [#allocation9]
    $region17: #{tpu_custom_call.1} parent=1 // pred_fallthru
      _
    // Predicated region
    $region18: #{tpu_custom_call.1} parent=1 // pred_check
      _
    $region19: #{tpu_custom_call.1} parent=1 // pred_check_branch
      %55 = sbr.rel (0) target = $region21
    $region20: #{tpu_custom_call.1} parent=1 // pred_region
      %s57 = ssub.s32 2048, 2048
      %58 = vsyncadd [#allocation9], %s57
      %s59 = sshll.u32 [#allocation10], 4
      %s60 = int_to_ptr.vmem [resolvable:$true] %s59
      %65 = dma.hbm_to_vmem [thread:$0]  %s4, 2048, %s60, [#allocation9], 128, 128, 8
    $region21: #{tpu_custom_call.1} parent=1 // pred_fallthru
      _
    // Predicated region
    $region22: #{tpu_custom_call.1} parent=1 // pred_check
      _
    $region23: #{tpu_custom_call.1} parent=1 // pred_check_branch
      %67 = sbr.rel (0) target = $region25
    $region24: #{tpu_custom_call.1} parent=1 // pred_region
      %68 = dma.done [#allocation3], 128
    $region25: #{tpu_custom_call.1} parent=1 // pred_fallthru
      _
    // Predicated region
    $region26: #{tpu_custom_call.1} parent=1 // pred_check
      _
    $region27: #{tpu_custom_call.1} parent=1 // pred_check_branch
      %70 = sbr.rel (0) target = $region29
    $region28: #{tpu_custom_call.1} parent=1 // pred_region
      %71 = dma.done [#allocation6], 128
    $region29: #{tpu_custom_call.1} parent=1 // pred_fallthru
      _
    // Predicated region
    $region30: #{tpu_custom_call.1} parent=1 // pred_check
      _
    $region31: #{tpu_custom_call.1} parent=1 // pred_check_branch
      %73 = sbr.rel (0) target = $region33
    $region32: #{tpu_custom_call.1} parent=1 // pred_region
      %74 = dma.done [#allocation6], 128
    $region33: #{tpu_custom_call.1} parent=1 // pred_fallthru
      _
    // Predicated region
    $region34: #{tpu_custom_call.1} parent=1 // pred_check
      _
    $region35: #{tpu_custom_call.1} parent=1 // pred_check_branch
      %76 = sbr.rel (0) target = $region37
    $region36: #{tpu_custom_call.1} parent=1 // pred_region
      %77 = dma.done [#allocation9], 128
    $region37: #{tpu_custom_call.1} parent=1 // pred_fallthru
      _
    // Predicated region
    $region38: #{tpu_custom_call.1} parent=1 // pred_check
      _
    $region39: #{tpu_custom_call.1} parent=1 // pred_check_branch
      %79 = sbr.rel (0) target = $region41
    $region40: #{tpu_custom_call.1} parent=1 // pred_region
      %80 = dma.done [#allocation9], 2048
    $region41: #{tpu_custom_call.1} parent=1 // pred_fallthru
      _
    %v81 = vld [vmem:[#allocation2] sm:$0xff]
    %v82 = vld [vmem:[#allocation5] sm:$0xff]
    %vm83 = vcmask 64512
    %v85 = vsel %vm83, %v81, 0
    %87 = vmatprep.subr.mxu0 0.0
    %88 = vmatpush1.msra.mxu0 0.0
    %89 = vmatprep.subr.mxu0 0.0
    %90 = vmatpush1.msra.mxu0 0.0
    %91 = vmatprep.subr.mxu0 0.0
    %92 = vmatpush1.msra.mxu0 0.0
    %93 = vmatprep.subr.mxu0 0.0
    %94 = vmatpush1.msra.mxu0 0.0
    %95 = vmatprep.subr.mxu0 0.0
    %96 = vmatpush1.msra.mxu0 0.0
    %97 = vmatprep.subr.mxu0 0.0
    %98 = vmatpush1.msra.mxu0 0.0
    %99 = vmatprep.subr.mxu0 0.0
    %100 = vmatpush1.msra.mxu0 0.0
    %101 = vmatprep.subr.mxu0 0.0
    %102 = vmatpush1.msra.mxu0 0.0
    %103 = vmatprep.subr.mxu0 0.0
    %104 = vmatpush1.msra.mxu0 0.0
    %105 = vmatprep.subr.mxu0 0.0
    %106 = vmatpush1.msra.mxu0 0.0
    %107 = vmatprep.subr.mxu0 0.0
    %108 = vmatpush1.msra.mxu0 0.0
    %109 = vmatprep.subr.mxu0 0.0
    %110 = vmatpush1.msra.mxu0 0.0
    %111 = vmatprep.subr.mxu0 0.0
    %112 = vmatpush1.msra.mxu0 0.0
    %113 = vmatprep.subr.mxu0 0.0
    %114 = vmatpush1.msra.mxu0 0.0
    %115 = vmatprep.subr.mxu0 0.0
    %116 = vmatpush1.msra.mxu0 0.0
    %117 = vmatprep.subr.mxu0 0.0
    %118 = vmatpush1.msra.mxu0 %v82
    %119 = vmatprep.subr.mxu0 0.0
    %120 = vmatpush2.msra.mxu0 0.0
    %121 = vmatprep.subr.mxu0 0.0
    %122 = vmatpush2.msra.mxu0 0.0
    %123 = vmatprep.subr.mxu0 0.0
    %124 = vmatpush2.msra.mxu0 0.0
    %125 = vmatprep.subr.mxu0 0.0
    %126 = vmatpush2.msra.mxu0 0.0
    %127 = vmatprep.subr.mxu0 0.0
    %128 = vmatpush2.msra.mxu0 0.0
    %129 = vmatprep.subr.mxu0 0.0
    %130 = vmatpush2.msra.mxu0 0.0
    %131 = vmatprep.subr.mxu0 0.0
    %132 = vmatpush2.msra.mxu0 0.0
    %133 = vmatprep.subr.mxu0 0.0
    %134 = vmatpush2.msra.mxu0 0.0
    %135 = vmatprep.subr.mxu0 0.0
    %136 = vmatpush2.msra.mxu0 0.0
    %137 = vmatprep.subr.mxu0 0.0
    %138 = vmatpush2.msra.mxu0 0.0
    %139 = vmatprep.subr.mxu0 0.0
    %140 = vmatpush2.msra.mxu0 0.0
    %141 = vmatprep.subr.mxu0 0.0
    %142 = vmatpush2.msra.mxu0 0.0
    %143 = vmatprep.subr.mxu0 0.0
    %144 = vmatpush2.msra.mxu0 0.0
    %145 = vmatprep.subr.mxu0 0.0
    %146 = vmatpush2.msra.mxu0 0.0
    %147 = vmatprep.subr.mxu0 0.0
    %148 = vmatpush2.msra.mxu0 0.0
    %149 = vmatprep.subr.mxu0 0.0
    %150 = vmatpush2.msra.mxu0 0.0
    %151 = vmatprep.mubr.f32.mxu0 0.0
    %152 = vmatmul.mubr.f32.gmra.mxu0 %v85
    %v153 = vpop.f32.mrf.mxu0
    %v154 = vadd.f32 0.0, %v153
    %v155 = vpop.f32.mrf.mxu0
    %156 = vdwg.mxu0
    %v157 = vld [vmem:[#allocation7] sm:$0xff]
    %v158 = vmul.f32 %v154, 0.9
    %v159 = vmul.f32 %v157, 0.1
    %v160 = vadd.f32 %v158, %v159
    %v161 = vld [vmem:[#allocation10] sm:$0xff]
    %v162 = vld [vmem:[#allocation10 + $0x8] sm:$0xff]
    %v163 = vld [vmem:[#allocation10 + $0x10] sm:$0xff]
    %v164 = vld [vmem:[#allocation10 + $0x18] sm:$0xff]
    %v165 = vld [vmem:[#allocation10 + $0x20] sm:$0xff]
    %v166 = vld [vmem:[#allocation10 + $0x28] sm:$0xff]
    %v167 = vld [vmem:[#allocation10 + $0x30] sm:$0xff]
    %v168 = vld [vmem:[#allocation10 + $0x38] sm:$0xff]
    %v169 = vld [vmem:[#allocation10 + $0x40] sm:$0xff]
    %v170 = vld [vmem:[#allocation10 + $0x48] sm:$0xff]
    %v171 = vld [vmem:[#allocation10 + $0x50] sm:$0xff]
    %v172 = vld [vmem:[#allocation10 + $0x58] sm:$0xff]
    %v173 = vld [vmem:[#allocation10 + $0x60] sm:$0xff]
    %v174 = vld [vmem:[#allocation10 + $0x68] sm:$0xff]
    %v175 = vld [vmem:[#allocation10 + $0x70] sm:$0xff]
    %v176 = vld [vmem:[#allocation10 + $0x78] sm:$0xff]
    %177 = vmatprep.subr.mxu0 0.0
    %178 = vmatpush1.msra.mxu0 %v176
    %179 = vmatprep.subr.mxu0 0.0
    %180 = vmatpush1.msra.mxu0 %v175
    %181 = vmatprep.subr.mxu0 0.0
    %182 = vmatpush1.msra.mxu0 %v174
    %183 = vmatprep.subr.mxu0 0.0
    %184 = vmatpush1.msra.mxu0 %v173
    %185 = vmatprep.subr.mxu0 0.0
    %186 = vmatpush1.msra.mxu0 %v172
    %187 = vmatprep.subr.mxu0 0.0
    %188 = vmatpush1.msra.mxu0 %v171
    %189 = vmatprep.subr.mxu0 0.0
    %190 = vmatpush1.msra.mxu0 %v170
    %191 = vmatprep.subr.mxu0 0.0
    %192 = vmatpush1.msra.mxu0 %v169
    %193 = vmatprep.subr.mxu0 0.0
    %194 = vmatpush1.msra.mxu0 %v168
    %195 = vmatprep.subr.mxu0 0.0
    %196 = vmatpush1.msra.mxu0 %v167
    %197 = vmatprep.subr.mxu0 0.0
    %198 = vmatpush1.msra.mxu0 %v166
    %199 = vmatprep.subr.mxu0 0.0
    %200 = vmatpush1.msra.mxu0 %v165
    %201 = vmatprep.subr.mxu0 0.0
    %202 = vmatpush1.msra.mxu0 %v164
    %203 = vmatprep.subr.mxu0 0.0
    %204 = vmatpush1.msra.mxu0 %v163
    %205 = vmatprep.subr.mxu0 0.0
    %206 = vmatpush1.msra.mxu0 %v162
    %207 = vmatprep.subr.mxu0 0.0
    %208 = vmatpush1.msra.mxu0 %v161
    %209 = vmatprep.subr.mxu0 0.0
    %210 = vmatpush2.msra.mxu0 0.0
    %211 = vmatprep.subr.mxu0 0.0
    %212 = vmatpush2.msra.mxu0 0.0
    %213 = vmatprep.subr.mxu0 0.0
    %214 = vmatpush2.msra.mxu0 0.0
    %215 = vmatprep.subr.mxu0 0.0
    %216 = vmatpush2.msra.mxu0 0.0
    %217 = vmatprep.subr.mxu0 0.0
    %218 = vmatpush2.msra.mxu0 0.0
    %219 = vmatprep.subr.mxu0 0.0
    %220 = vmatpush2.msra.mxu0 0.0
    %221 = vmatprep.subr.mxu0 0.0
    %222 = vmatpush2.msra.mxu0 0.0
    %223 = vmatprep.subr.mxu0 0.0
    %224 = vmatpush2.msra.mxu0 0.0
    %225 = vmatprep.subr.mxu0 0.0
    %226 = vmatpush2.msra.mxu0 0.0
    %227 = vmatprep.subr.mxu0 0.0
    %228 = vmatpush2.msra.mxu0 0.0
    %229 = vmatprep.subr.mxu0 0.0
    %230 = vmatpush2.msra.mxu0 0.0
    %231 = vmatprep.subr.mxu0 0.0
    %232 = vmatpush2.msra.mxu0 0.0
    %233 = vmatprep.subr.mxu0 0.0
    %234 = vmatpush2.msra.mxu0 0.0
    %235 = vmatprep.subr.mxu0 0.0
    %236 = vmatpush2.msra.mxu0 0.0
    %237 = vmatprep.subr.mxu0 0.0
    %238 = vmatpush2.msra.mxu0 0.0
    %239 = vmatprep.subr.mxu0 0.0
    %240 = vmatpush2.msra.mxu0 0.0
    %241 = vmatprep.mubr.f32.mxu0 0.0
    %242 = vmatmul.mubr.f32.gmra.mxu0 %v160
    %v243 = vpop.f32.mrf.mxu0
    %v244 = vadd.f32 0.0, %v243
    %v245 = vpop.f32.mrf.mxu0
    %246 = vdwg.mxu0
    %v247 = vmul.f32 %v244, 0.5596158
    %v248 = vmul.f32 %v160, 0.4403842
    %v249 = vadd.f32 %v247, %v248
    %v250 = vld [vmem:[#allocation8] sm:$0xff]
    %v251 = vadd.f32 %v249, %v250
    %252 = vst [vmem:[#allocation11] sm:$0xff] %v251
    // Predicated region
    $region42: #{tpu_custom_call.1} parent=1 // pred_check
      _
    $region43: #{tpu_custom_call.1} parent=1 // pred_check_branch
      %254 = sbr.rel (0) target = $region45
    $region44: #{tpu_custom_call.1} parent=1 // pred_region
      %s256 = ssub.s32 128, 128
      %257 = vsyncadd [#allocation4], %s256
      %s259 = sshll.u32 [#allocation11], 4
      %s260 = int_to_ptr.vmem [resolvable:$true] %s259
      %262 = dma.vmem_to_hbm [thread:$0]  %s260, 128, %s5, [#allocation4]
    $region45: #{tpu_custom_call.1} parent=1 // pred_fallthru
      _
    // Predicated region
    $region46: #{tpu_custom_call.1} parent=1 // pred_check
      _
    $region47: #{tpu_custom_call.1} parent=1 // pred_check_branch
      %264 = sbr.rel (0) target = $region49
    $region48: #{tpu_custom_call.1} parent=1 // pred_region
      %265 = dma.done [#allocation4], 128
    $region49: #{tpu_custom_call.1} parent=1 // pred_fallthru
      _
    %266 = vsyncpa [#allocation3], 1
    %267 = vsyncpa [#allocation6], 1
    %268 = vsyncpa [#allocation9], 1
    %269 = vsyncpa [#allocation4], 1

// kernel: tpu_custom_call.1
$region0: #{tpu_custom_call.1}
  #allocation0 [shape = 'u32[]', space=smem, size = 0x4, offset = 0x4, fixed_abs, tag = 'smem constant byte address 0x4 - core index']
  #allocation1 [shape = 'u32[144,128]{1,0:T(1,128)}', space=vmem, size = 0x12000, scoped, tag = 'internal scratch']
  %s0 = inlined_call_operand.hbm [shape: f32[8,8], index: 0, kind: input, shape index: {}]
  %s1 = inlined_call_operand.hbm [shape: f32[8,128], index: 1, kind: input, shape index: {}]
  %s2 = inlined_call_operand.hbm [shape: f32[8,128], index: 2, kind: input, shape index: {}]
  %s3 = inlined_call_operand.hbm [shape: f32[8,128], index: 3, kind: input, shape index: {}]
  %s4 = inlined_call_operand.hbm [shape: f32[128,128], index: 4, kind: input, shape index: {}]
  %s5 = inlined_call_operand.hbm [shape: f32[8,128], index: 5, kind: output, shape index: {}]
  %s6 = sld [smem:[#allocation0]]
  $region50: #{tpu_custom_call.1} parent=0
    _
  %s8 = ssub.s32 1, %s6
  %s9 = scalar_select 0, %s8, %s6
  $region1: #{tpu_custom_call.1} parent=0
    #allocation2 [shape = 'u8[4096]{0}', space=vmem, size = 0x1000, scoped, tag = 'input window, operand 0, single buffered']
    #allocation3 [shape = 's32[1]{0}', space=sflag, size = 0x4, scoped, tag = 'scoped memory for tpu_custom_call.1']
    #allocation4 [shape = 's32[1]{0}', space=sflag, size = 0x4, scoped, tag = 'scoped memory for tpu_custom_call.1']
    #allocation5 [shape = 'u8[4096]{0}', space=vmem, size = 0x1000, scoped, tag = 'input window, operand 1, single buffered']
    #allocation6 [shape = 's32[1]{0}', space=sflag, size = 0x4, scoped, tag = 'scoped memory for tpu_custom_call.1']
    #allocation7 [shape = 'u8[4096]{0}', space=vmem, size = 0x1000, scoped, tag = 'input window, operand 2, single buffered']
    #allocation8 [shape = 'u8[4096]{0}', space=vmem, size = 0x1000, scoped, tag = 'input window, operand 3, single buffered']
    #allocation9 [shape = 's32[1]{0}', space=sflag, size = 0x4, scoped, tag = 'scoped memory for tpu_custom_call.1']
    #allocation10 [shape = 'u8[65536]{0}', space=vmem, size = 0x10000, scoped, tag = 'input window, operand 4, single buffered']
    #allocation11 [shape = 'u8[4096]{0}', space=vmem, size = 0x1000, scoped, tag = 'output window, operand 0, single buffered']
    %10 = vsyncpa [#allocation3], 0
    %11 = vsyncpa [#allocation6], 0
    %12 = vsyncpa [#allocation9], 0
    %13 = vsyncpa [#allocation4], 0
    // Predicated region
    $region2: #{tpu_custom_call.1} parent=1 // pred_check
      _
    $region3: #{tpu_custom_call.1} parent=1 // pred_check_branch
      %15 = sbr.rel (0) target = $region5
    $region4: #{tpu_custom_call.1} parent=1 // pred_region
      %s17 = ssub.s32 128, 128
      %18 = vsyncadd [#allocation3], %s17
      %s20 = sshll.u32 [#allocation2], 4
      %s21 = int_to_ptr.vmem [resolvable:$true] %s20
      %23 = dma.hbm_to_vmem [thread:$0]  %s0, 128, %s21, [#allocation3]
    $region5: #{tpu_custom_call.1} parent=1 // pred_fallthru
      _
    // Predicated region
    $region6: #{tpu_custom_call.1} parent=1 // pred_check
      _
    $region7: #{tpu_custom_call.1} parent=1 // pred_check_branch
      %25 = sbr.rel (0) target = $region9
    $region8: #{tpu_custom_call.1} parent=1 // pred_region
      %s27 = ssub.s32 128, 128
      %28 = vsyncadd [#allocation6], %s27
      %s30 = sshll.u32 [#allocation5], 4
      %s31 = int_to_ptr.vmem [resolvable:$true] %s30
      %33 = dma.hbm_to_vmem [thread:$0]  %s1, 128, %s31, [#allocation6]
    $region9: #{tpu_custom_call.1} parent=1 // pred_fallthru
      _
    // Predicated region
    $region10: #{tpu_custom_call.1} parent=1 // pred_check
      _
    $region11: #{tpu_custom_call.1} parent=1 // pred_check_branch
      %35 = sbr.rel (0) target = $region13
    $region12: #{tpu_custom_call.1} parent=1 // pred_region
      %s37 = ssub.s32 128, 128
      %38 = vsyncadd [#allocation6], %s37
      %s40 = sshll.u32 [#allocation7], 4
      %s41 = int_to_ptr.vmem [resolvable:$true] %s40
      %43 = dma.hbm_to_vmem [thread:$0]  %s2, 128, %s41, [#allocation6]
    $region13: #{tpu_custom_call.1} parent=1 // pred_fallthru
      _
    // Predicated region
    $region14: #{tpu_custom_call.1} parent=1 // pred_check
      _
    $region15: #{tpu_custom_call.1} parent=1 // pred_check_branch
      %45 = sbr.rel (0) target = $region17
    $region16: #{tpu_custom_call.1} parent=1 // pred_region
      %s47 = ssub.s32 128, 128
      %48 = vsyncadd [#allocation9], %s47
      %s50 = sshll.u32 [#allocation8], 4
      %s51 = int_to_ptr.vmem [resolvable:$true] %s50
      %53 = dma.hbm_to_vmem [thread:$0]  %s3, 128, %s51, [#allocation9]
    $region17: #{tpu_custom_call.1} parent=1 // pred_fallthru
      _
    // Predicated region
    $region18: #{tpu_custom_call.1} parent=1 // pred_check
      _
    $region19: #{tpu_custom_call.1} parent=1 // pred_check_branch
      %55 = sbr.rel (0) target = $region21
    $region20: #{tpu_custom_call.1} parent=1 // pred_region
      %s57 = ssub.s32 2048, 2048
      %58 = vsyncadd [#allocation9], %s57
      %s59 = sshll.u32 [#allocation10], 4
      %s60 = int_to_ptr.vmem [resolvable:$true] %s59
      %65 = dma.hbm_to_vmem [thread:$0]  %s4, 2048, %s60, [#allocation9], 128, 128, 8
    $region21: #{tpu_custom_call.1} parent=1 // pred_fallthru
      _
    // Predicated region
    $region22: #{tpu_custom_call.1} parent=1 // pred_check
      _
    $region23: #{tpu_custom_call.1} parent=1 // pred_check_branch
      %67 = sbr.rel (0) target = $region25
    $region24: #{tpu_custom_call.1} parent=1 // pred_region
      %68 = dma.done [#allocation3], 128
    $region25: #{tpu_custom_call.1} parent=1 // pred_fallthru
      _
    // Predicated region
    $region26: #{tpu_custom_call.1} parent=1 // pred_check
      _
    $region27: #{tpu_custom_call.1} parent=1 // pred_check_branch
      %70 = sbr.rel (0) target = $region29
    $region28: #{tpu_custom_call.1} parent=1 // pred_region
      %71 = dma.done [#allocation6], 128
    $region29: #{tpu_custom_call.1} parent=1 // pred_fallthru
      _
    // Predicated region
    $region30: #{tpu_custom_call.1} parent=1 // pred_check
      _
    $region31: #{tpu_custom_call.1} parent=1 // pred_check_branch
      %73 = sbr.rel (0) target = $region33
    $region32: #{tpu_custom_call.1} parent=1 // pred_region
      %74 = dma.done [#allocation6], 128
    $region33: #{tpu_custom_call.1} parent=1 // pred_fallthru
      _
    // Predicated region
    $region34: #{tpu_custom_call.1} parent=1 // pred_check
      _
    $region35: #{tpu_custom_call.1} parent=1 // pred_check_branch
      %76 = sbr.rel (0) target = $region37
    $region36: #{tpu_custom_call.1} parent=1 // pred_region
      %77 = dma.done [#allocation9], 128
    $region37: #{tpu_custom_call.1} parent=1 // pred_fallthru
      _
    // Predicated region
    $region38: #{tpu_custom_call.1} parent=1 // pred_check
      _
    $region39: #{tpu_custom_call.1} parent=1 // pred_check_branch
      %79 = sbr.rel (0) target = $region41
    $region40: #{tpu_custom_call.1} parent=1 // pred_region
      %80 = dma.done [#allocation9], 2048
    $region41: #{tpu_custom_call.1} parent=1 // pred_fallthru
      _
    %v81 = vld [vmem:[#allocation2] sm:$0xff]
    %v82 = vld [vmem:[#allocation5] sm:$0xff]
    %vm83 = vcmask 64512
    %v85 = vsel %vm83, %v81, 0
    %87 = vmatprep.subr.mxu0 0.0
    %88 = vmatpush1.msra.mxu0 0.0
    %89 = vmatprep.subr.mxu0 0.0
    %90 = vmatpush1.msra.mxu0 0.0
    %91 = vmatprep.subr.mxu0 0.0
    %92 = vmatpush1.msra.mxu0 0.0
    %93 = vmatprep.subr.mxu0 0.0
    %94 = vmatpush1.msra.mxu0 0.0
    %95 = vmatprep.subr.mxu0 0.0
    %96 = vmatpush1.msra.mxu0 0.0
    %97 = vmatprep.subr.mxu0 0.0
    %98 = vmatpush1.msra.mxu0 0.0
    %99 = vmatprep.subr.mxu0 0.0
    %100 = vmatpush1.msra.mxu0 0.0
    %101 = vmatprep.subr.mxu0 0.0
    %102 = vmatpush1.msra.mxu0 0.0
    %103 = vmatprep.subr.mxu0 0.0
    %104 = vmatpush1.msra.mxu0 0.0
    %105 = vmatprep.subr.mxu0 0.0
    %106 = vmatpush1.msra.mxu0 0.0
    %107 = vmatprep.subr.mxu0 0.0
    %108 = vmatpush1.msra.mxu0 0.0
    %109 = vmatprep.subr.mxu0 0.0
    %110 = vmatpush1.msra.mxu0 0.0
    %111 = vmatprep.subr.mxu0 0.0
    %112 = vmatpush1.msra.mxu0 0.0
    %113 = vmatprep.subr.mxu0 0.0
    %114 = vmatpush1.msra.mxu0 0.0
    %115 = vmatprep.subr.mxu0 0.0
    %116 = vmatpush1.msra.mxu0 0.0
    %117 = vmatprep.subr.mxu0 0.0
    %118 = vmatpush1.msra.mxu0 %v82
    %119 = vmatprep.subr.mxu0 0.0
    %120 = vmatpush2.msra.mxu0 0.0
    %121 = vmatprep.subr.mxu0 0.0
    %122 = vmatpush2.msra.mxu0 0.0
    %123 = vmatprep.subr.mxu0 0.0
    %124 = vmatpush2.msra.mxu0 0.0
    %125 = vmatprep.subr.mxu0 0.0
    %126 = vmatpush2.msra.mxu0 0.0
    %127 = vmatprep.subr.mxu0 0.0
    %128 = vmatpush2.msra.mxu0 0.0
    %129 = vmatprep.subr.mxu0 0.0
    %130 = vmatpush2.msra.mxu0 0.0
    %131 = vmatprep.subr.mxu0 0.0
    %132 = vmatpush2.msra.mxu0 0.0
    %133 = vmatprep.subr.mxu0 0.0
    %134 = vmatpush2.msra.mxu0 0.0
    %135 = vmatprep.subr.mxu0 0.0
    %136 = vmatpush2.msra.mxu0 0.0
    %137 = vmatprep.subr.mxu0 0.0
    %138 = vmatpush2.msra.mxu0 0.0
    %139 = vmatprep.subr.mxu0 0.0
    %140 = vmatpush2.msra.mxu0 0.0
    %141 = vmatprep.subr.mxu0 0.0
    %142 = vmatpush2.msra.mxu0 0.0
    %143 = vmatprep.subr.mxu0 0.0
    %144 = vmatpush2.msra.mxu0 0.0
    %145 = vmatprep.subr.mxu0 0.0
    %146 = vmatpush2.msra.mxu0 0.0
    %147 = vmatprep.subr.mxu0 0.0
    %148 = vmatpush2.msra.mxu0 0.0
    %149 = vmatprep.subr.mxu0 0.0
    %150 = vmatpush2.msra.mxu0 0.0
    %151 = vmatprep.mubr.f32.mxu0 0.0
    %152 = vmatmul.mubr.f32.gmra.mxu0 %v85
    %v153 = vpop.f32.mrf.mxu0
    %v154 = vadd.f32 0.0, %v153
    %v155 = vpop.f32.mrf.mxu0
    %156 = vdwg.mxu0
    %v157 = vld [vmem:[#allocation7] sm:$0xff]
    %v158 = vmul.f32 %v154, 0.9
    %v159 = vmul.f32 %v157, 0.1
    %v160 = vadd.f32 %v158, %v159
    %v161 = vld [vmem:[#allocation10] sm:$0xff]
    %v162 = vld [vmem:[#allocation10 + $0x8] sm:$0xff]
    %v163 = vld [vmem:[#allocation10 + $0x10] sm:$0xff]
    %v164 = vld [vmem:[#allocation10 + $0x18] sm:$0xff]
    %v165 = vld [vmem:[#allocation10 + $0x20] sm:$0xff]
    %v166 = vld [vmem:[#allocation10 + $0x28] sm:$0xff]
    %v167 = vld [vmem:[#allocation10 + $0x30] sm:$0xff]
    %v168 = vld [vmem:[#allocation10 + $0x38] sm:$0xff]
    %v169 = vld [vmem:[#allocation10 + $0x40] sm:$0xff]
    %v170 = vld [vmem:[#allocation10 + $0x48] sm:$0xff]
    %v171 = vld [vmem:[#allocation10 + $0x50] sm:$0xff]
    %v172 = vld [vmem:[#allocation10 + $0x58] sm:$0xff]
    %v173 = vld [vmem:[#allocation10 + $0x60] sm:$0xff]
    %v174 = vld [vmem:[#allocation10 + $0x68] sm:$0xff]
    %v175 = vld [vmem:[#allocation10 + $0x70] sm:$0xff]
    %v176 = vld [vmem:[#allocation10 + $0x78] sm:$0xff]
    %177 = vmatprep.subr.mxu0 0.0
    %178 = vmatpush1.msra.mxu0 %v176
    %179 = vmatprep.subr.mxu0 0.0
    %180 = vmatpush1.msra.mxu0 %v175
    %181 = vmatprep.subr.mxu0 0.0
    %182 = vmatpush1.msra.mxu0 %v174
    %183 = vmatprep.subr.mxu0 0.0
    %184 = vmatpush1.msra.mxu0 %v173
    %185 = vmatprep.subr.mxu0 0.0
    %186 = vmatpush1.msra.mxu0 %v172
    %187 = vmatprep.subr.mxu0 0.0
    %188 = vmatpush1.msra.mxu0 %v171
    %189 = vmatprep.subr.mxu0 0.0
    %190 = vmatpush1.msra.mxu0 %v170
    %191 = vmatprep.subr.mxu0 0.0
    %192 = vmatpush1.msra.mxu0 %v169
    %193 = vmatprep.subr.mxu0 0.0
    %194 = vmatpush1.msra.mxu0 %v168
    %195 = vmatprep.subr.mxu0 0.0
    %196 = vmatpush1.msra.mxu0 %v167
    %197 = vmatprep.subr.mxu0 0.0
    %198 = vmatpush1.msra.mxu0 %v166
    %199 = vmatprep.subr.mxu0 0.0
    %200 = vmatpush1.msra.mxu0 %v165
    %201 = vmatprep.subr.mxu0 0.0
    %202 = vmatpush1.msra.mxu0 %v164
    %203 = vmatprep.subr.mxu0 0.0
    %204 = vmatpush1.msra.mxu0 %v163
    %205 = vmatprep.subr.mxu0 0.0
    %206 = vmatpush1.msra.mxu0 %v162
    %207 = vmatprep.subr.mxu0 0.0
    %208 = vmatpush1.msra.mxu0 %v161
    %209 = vmatprep.subr.mxu0 0.0
    %210 = vmatpush2.msra.mxu0 0.0
    %211 = vmatprep.subr.mxu0 0.0
    %212 = vmatpush2.msra.mxu0 0.0
    %213 = vmatprep.subr.mxu0 0.0
    %214 = vmatpush2.msra.mxu0 0.0
    %215 = vmatprep.subr.mxu0 0.0
    %216 = vmatpush2.msra.mxu0 0.0
    %217 = vmatprep.subr.mxu0 0.0
    %218 = vmatpush2.msra.mxu0 0.0
    %219 = vmatprep.subr.mxu0 0.0
    %220 = vmatpush2.msra.mxu0 0.0
    %221 = vmatprep.subr.mxu0 0.0
    %222 = vmatpush2.msra.mxu0 0.0
    %223 = vmatprep.subr.mxu0 0.0
    %224 = vmatpush2.msra.mxu0 0.0
    %225 = vmatprep.subr.mxu0 0.0
    %226 = vmatpush2.msra.mxu0 0.0
    %227 = vmatprep.subr.mxu0 0.0
    %228 = vmatpush2.msra.mxu0 0.0
    %229 = vmatprep.subr.mxu0 0.0
    %230 = vmatpush2.msra.mxu0 0.0
    %231 = vmatprep.subr.mxu0 0.0
    %232 = vmatpush2.msra.mxu0 0.0
    %233 = vmatprep.subr.mxu0 0.0
    %234 = vmatpush2.msra.mxu0 0.0
    %235 = vmatprep.subr.mxu0 0.0
    %236 = vmatpush2.msra.mxu0 0.0
    %237 = vmatprep.subr.mxu0 0.0
    %238 = vmatpush2.msra.mxu0 0.0
    %239 = vmatprep.subr.mxu0 0.0
    %240 = vmatpush2.msra.mxu0 0.0
    %241 = vmatprep.mubr.f32.mxu0 0.0
    %242 = vmatmul.mubr.f32.gmra.mxu0 %v160
    %v243 = vpop.f32.mrf.mxu0
    %v244 = vadd.f32 0.0, %v243
    %v245 = vpop.f32.mrf.mxu0
    %246 = vdwg.mxu0
    %v247 = vmul.f32 %v244, 0.5596158
    %v248 = vmul.f32 %v160, 0.4403842
    %v249 = vadd.f32 %v247, %v248
    %v250 = vld [vmem:[#allocation8] sm:$0xff]
    %v251 = vadd.f32 %v249, %v250
    %252 = vst [vmem:[#allocation11] sm:$0xff] %v251
    // Predicated region
    $region42: #{tpu_custom_call.1} parent=1 // pred_check
      _
    $region43: #{tpu_custom_call.1} parent=1 // pred_check_branch
      %254 = sbr.rel (0) target = $region45
    $region44: #{tpu_custom_call.1} parent=1 // pred_region
      %s256 = ssub.s32 128, 128
      %257 = vsyncadd [#allocation4], %s256
      %s259 = sshll.u32 [#allocation11], 4
      %s260 = int_to_ptr.vmem [resolvable:$true] %s259
      %262 = dma.vmem_to_hbm [thread:$0]  %s260, 128, %s5, [#allocation4]
    $region45: #{tpu_custom_call.1} parent=1 // pred_fallthru
      _
    // Predicated region
    $region46: #{tpu_custom_call.1} parent=1 // pred_check
      _
    $region47: #{tpu_custom_call.1} parent=1 // pred_check_branch
      %264 = sbr.rel (0) target = $region49
    $region48: #{tpu_custom_call.1} parent=1 // pred_region
      %265 = dma.done [#allocation4], 128
    $region49: #{tpu_custom_call.1} parent=1 // pred_fallthru
      _
    %266 = vsyncpa [#allocation3], 1
    %267 = vsyncpa [#allocation6], 1
    %268 = vsyncpa [#allocation9], 1
    %269 = vsyncpa [#allocation4], 1

</llo_original>
